<compile_context>
chip_gen: v7x
topology: tpu7x:2x2x1
jax: 0.10.0
libtpu: 0.0.40
codegen_flags: <defaults>
</compile_context>

<pallas_src>
import jax
import jax.numpy as jnp
from jax import lax
from jax.experimental import pallas as pl
from jax.experimental.pallas import tpu as pltpu

LANES = 128          # lane axis width (batch elements per row)
SUBLANES = 8
INNER_ROWS = 16      # rows per in-kernel chunk (2 vregs per live value)

# ---- packed parameter slab layout (flat f32[128], 105 words used) ----------
W1_OFF = 0            # w1[j, k] at W1_OFF + 2*j + k   (j<8 out, k<2 in)
B1_OFF = 16           # b1[j]
W2_OFF = 24           # w2[j, k] at W2_OFF + 8*j + k   (j<8 out, k<8 in)
B2_OFF = 88           # b2[j]
W3_OFF = 96           # w3[0, k] at W3_OFF + k         (k<8 in)
B3_OFF = 104          # b3[0]
PARAM_SLAB = 128      # padded length (1-D SMEM pads to next_pow2(4*N) bytes)


def _round_up(n, m):
    return ((n + m - 1) // m) * m


def mlp_kernel(p_ref, x_ref, o_ref):
    """p_ref: f32[128] SMEM; x_ref: (2, R, 128) VMEM; o_ref: (R, 128) VMEM."""
    r_block = o_ref.shape[0]

    # Hoist all 105 scalar weight reads out of the row loop (sreg-resident,
    # scalar slot only; avoids per-iteration SMEM traffic).
    w1 = [(p_ref[W1_OFF + 2 * i], p_ref[W1_OFF + 2 * i + 1]) for i in range(8)]
    b1 = [p_ref[B1_OFF + i] for i in range(8)]
    w2 = [[p_ref[W2_OFF + 8 * j + i] for i in range(8)] for j in range(8)]
    b2 = [p_ref[B2_OFF + j] for j in range(8)]
    w3 = [p_ref[W3_OFF + j] for j in range(8)]
    b3 = p_ref[B3_OFF]

    n_iter = r_block // INNER_ROWS   # static

    def row_chunk(c, carry):
        r0 = pl.multiple_of(c * INNER_ROWS, INNER_ROWS)
        x0 = x_ref[0, pl.ds(r0, INNER_ROWS), :]     # (INNER_ROWS, 128)
        x1 = x_ref[1, pl.ds(r0, INNER_ROWS), :]

        # fc1 (+tanh) fused with fc2 accumulation: ~12 live (16,128) values.
        acc2 = [None] * 8
        for i in range(8):                            # fc1 output index
            h = jnp.tanh(w1[i][0] * x0 + w1[i][1] * x1 + b1[i])
            for j in range(8):                        # fc2 output index
                t = h * w2[j][i]
                acc2[j] = t if acc2[j] is None else acc2[j] + t

        # fc2 bias + tanh fused with fc3 accumulation.
        out = jnp.tanh(acc2[0] + b2[0]) * w3[0] + b3
        for j in range(1, 8):
            out = out + jnp.tanh(acc2[j] + b2[j]) * w3[j]

        o_ref[pl.ds(r0, INNER_ROWS), :] = out.astype(o_ref.dtype)
        return carry

    lax.fori_loop(0, n_iter, row_chunk, 0)


def pack_params(params):
    """Pack PyTorch-layout (out,in) weights + biases into one flat f32 slab."""
    (w1, b1), (w2, b2), (w3, b3) = params
    flat = jnp.concatenate([
        w1.reshape(-1), b1.reshape(-1),
        w2.reshape(-1), b2.reshape(-1),
        w3.reshape(-1), b3.reshape(-1),
    ]).astype(jnp.float32)
    return jnp.pad(flat, (0, PARAM_SLAB - flat.shape[0]))


def mlp_forward_feature_major(xT, packed_params, *, rows_per_step=2048):
    """xT: (2, B) feature-major f32 -> (B,) f32."""
    B = xT.shape[1]

    rows = pl.cdiv(B, LANES)                      # rows of 128 batch elements
    # Cap so the double-buffered footprint stays far below v7x's 64 MiB VMEM
    # (4096 rows -> 2 MiB in + 1 MiB out per buffer -> ~6 MiB double-buffered).
    rows_per_step = _round_up(min(rows_per_step, 4096), INNER_ROWS)
    # Aim for >=2 grid steps when there is enough work (v7x: 2 TensorCores).
    r_block = min(rows_per_step, _round_up(pl.cdiv(rows, 2), INNER_ROWS))
    r_block = max(r_block, INNER_ROWS)
    padded_rows = _round_up(rows, r_block)
    grid = (padded_rows // r_block,)

    n_pad = padded_rows * LANES - B
    if n_pad:
        xT = jnp.pad(xT, ((0, 0), (0, n_pad)))    # padded lanes: harmless tanh(0..)
    x3 = xT.reshape(2, padded_rows, LANES)

    n_elems = padded_rows * LANES
    cost = pl.CostEstimate(flops=176 * n_elems,
                           transcendentals=16 * n_elems,
                           bytes_accessed=12 * n_elems)

    out = pl.pallas_call(
        mlp_kernel,
        out_shape=jax.ShapeDtypeStruct((padded_rows, LANES), jnp.float32),
        grid=grid,
        in_specs=[
            pl.BlockSpec(memory_space=pltpu.MemorySpace.SMEM),
            pl.BlockSpec((2, r_block, LANES), lambda i: (0, i, 0)),
        ],
        out_specs=pl.BlockSpec((r_block, LANES), lambda i: (i, 0)),
        compiler_params=pltpu.CompilerParams(
            dimension_semantics=("parallel",),        # shard grid across v7x's 2 TCs
            vmem_limit_bytes=32 * 1024 * 1024,        # v5e default scoped limit is 16 MiB
        ),
        cost_estimate=cost,
    )(packed_params, x3)

    return out.reshape(padded_rows * LANES)[:B]


def mlp_forward(x, packed_params, *, rows_per_step=2048):
    """x: (B, 2) f32 -> (B, 1) f32, matching MyModel.forward."""
    B = x.shape[0]
    # TODO(synk): when fused into a larger pipeline, call
    # mlp_forward_feature_major directly with a (2, B) feature-major input to
    # skip this extra HBM transpose pass.
    xT = jnp.transpose(x.astype(jnp.float32))          # (2, B)
    y = mlp_forward_feature_major(xT, packed_params, rows_per_step=rows_per_step)
    return y.reshape(B, 1)


def init_params(key):
    # Deterministic init mimicking PyTorch nn.Linear default:
    # U(-1/sqrt(fan_in), 1/sqrt(fan_in)); weights kept in PyTorch (out, in) layout.
    def linear(key, fan_in, fan_out):
        kw, kb = jax.random.split(key)
        bound = 1.0 / jnp.sqrt(jnp.float32(fan_in))
        w = jax.random.uniform(kw, (fan_out, fan_in), jnp.float32,
                               minval=-bound, maxval=bound)
        b = jax.random.uniform(kb, (fan_out,), jnp.float32,
                               minval=-bound, maxval=bound)
        return w, b

    k1, k2, k3 = jax.random.split(key, 3)
    return (linear(k1, 2, 8), linear(k2, 8, 8), linear(k3, 8, 1))


def reference_forward(x, params):
    (w1, b1), (w2, b2), (w3, b3) = params
    h = jnp.tanh(x @ w1.T + b1)
    h = jnp.tanh(h @ w2.T + b2)
    return h @ w3.T + b3


if __name__ == "__main__":
    key = jax.random.PRNGKey(0)
    k_params, k_x1, k_x2 = jax.random.split(key, 3)

    params = init_params(k_params)
    packed = pack_params(params)

    # Tiny batch (not lane-aligned): exercises the zero-pad path, grid of 1.
    B1 = 8
    x1 = jax.random.normal(k_x1, (B1, 2), jnp.float32)
    out1 = jax.block_until_ready(mlp_forward(x1, packed))
    ref1 = reference_forward(x1, params)
    assert out1.shape == (B1, 1)
    assert jnp.allclose(out1, ref1, atol=1e-5, rtol=1e-5)

    # Larger, non-tile-divisible batch: exercises the padded multi-step
    # "parallel" grid with sublane-dense (R, 128) tiles and the in-kernel
    # row-chunk loop (grid = 2 steps here).
    B2 = 6000
    x2 = jax.random.normal(k_x2, (B2, 2), jnp.float32)
    out2 = jax.block_until_ready(mlp_forward(x2, packed))
    ref2 = reference_forward(x2, params)
    assert out2.shape == (B2, 1)
    assert jnp.allclose(out2, ref2, atol=1e-5, rtol=1e-5)

    print("KERNEL_OK")
</pallas_src>

<mosaic_0001>
module attributes {stable_mosaic.version = 11 : i64} {
  func.func @mlp_kernel(%arg0: i32, %arg1: memref<128xf32, #tpu.memory_space<smem>>, %arg2: memref<2x16x128xf32, #tpu.memory_space<vmem>>, %arg3: memref<16x128xf32, #tpu.memory_space<vmem>>) attributes {dimension_semantics = [#tpu.dimension_semantics<parallel>], iteration_bounds = array<i64: 1>, scalar_prefetch = 0 : i64, scratch_operands = 0 : i64, tpu.core_type = #tpu.core_type<tc>, window_params = [{transform_indices = @transform_0, window_bounds = array<i64: 128>}, {transform_indices = @transform_1, window_bounds = array<i64: 2, 16, 128>}, {transform_indices = @transform_2, window_bounds = array<i64: 16, 128>}]} {
    %c0 = arith.constant 0 : index
    %0 = memref.load %arg1[%c0] : memref<128xf32, #tpu.memory_space<smem>>
    %c1 = arith.constant 1 : index
    %1 = memref.load %arg1[%c1] : memref<128xf32, #tpu.memory_space<smem>>
    %c2 = arith.constant 2 : index
    %2 = memref.load %arg1[%c2] : memref<128xf32, #tpu.memory_space<smem>>
    %c3 = arith.constant 3 : index
    %3 = memref.load %arg1[%c3] : memref<128xf32, #tpu.memory_space<smem>>
    %c4 = arith.constant 4 : index
    %4 = memref.load %arg1[%c4] : memref<128xf32, #tpu.memory_space<smem>>
    %c5 = arith.constant 5 : index
    %5 = memref.load %arg1[%c5] : memref<128xf32, #tpu.memory_space<smem>>
    %c6 = arith.constant 6 : index
    %6 = memref.load %arg1[%c6] : memref<128xf32, #tpu.memory_space<smem>>
    %c7 = arith.constant 7 : index
    %7 = memref.load %arg1[%c7] : memref<128xf32, #tpu.memory_space<smem>>
    %c8 = arith.constant 8 : index
    %8 = memref.load %arg1[%c8] : memref<128xf32, #tpu.memory_space<smem>>
    %c9 = arith.constant 9 : index
    %9 = memref.load %arg1[%c9] : memref<128xf32, #tpu.memory_space<smem>>
    %c10 = arith.constant 10 : index
    %10 = memref.load %arg1[%c10] : memref<128xf32, #tpu.memory_space<smem>>
    %c11 = arith.constant 11 : index
    %11 = memref.load %arg1[%c11] : memref<128xf32, #tpu.memory_space<smem>>
    %c12 = arith.constant 12 : index
    %12 = memref.load %arg1[%c12] : memref<128xf32, #tpu.memory_space<smem>>
    %c13 = arith.constant 13 : index
    %13 = memref.load %arg1[%c13] : memref<128xf32, #tpu.memory_space<smem>>
    %c14 = arith.constant 14 : index
    %14 = memref.load %arg1[%c14] : memref<128xf32, #tpu.memory_space<smem>>
    %c15 = arith.constant 15 : index
    %15 = memref.load %arg1[%c15] : memref<128xf32, #tpu.memory_space<smem>>
    %c16 = arith.constant 16 : index
    %16 = memref.load %arg1[%c16] : memref<128xf32, #tpu.memory_space<smem>>
    %c17 = arith.constant 17 : index
    %17 = memref.load %arg1[%c17] : memref<128xf32, #tpu.memory_space<smem>>
    %c18 = arith.constant 18 : index
    %18 = memref.load %arg1[%c18] : memref<128xf32, #tpu.memory_space<smem>>
    %c19 = arith.constant 19 : index
    %19 = memref.load %arg1[%c19] : memref<128xf32, #tpu.memory_space<smem>>
    %c20 = arith.constant 20 : index
    %20 = memref.load %arg1[%c20] : memref<128xf32, #tpu.memory_space<smem>>
    %c21 = arith.constant 21 : index
    %21 = memref.load %arg1[%c21] : memref<128xf32, #tpu.memory_space<smem>>
    %c22 = arith.constant 22 : index
    %22 = memref.load %arg1[%c22] : memref<128xf32, #tpu.memory_space<smem>>
    %c23 = arith.constant 23 : index
    %23 = memref.load %arg1[%c23] : memref<128xf32, #tpu.memory_space<smem>>
    %c24 = arith.constant 24 : index
    %24 = memref.load %arg1[%c24] : memref<128xf32, #tpu.memory_space<smem>>
    %c25 = arith.constant 25 : index
    %25 = memref.load %arg1[%c25] : memref<128xf32, #tpu.memory_space<smem>>
    %c26 = arith.constant 26 : index
    %26 = memref.load %arg1[%c26] : memref<128xf32, #tpu.memory_space<smem>>
    %c27 = arith.constant 27 : index
    %27 = memref.load %arg1[%c27] : memref<128xf32, #tpu.memory_space<smem>>
    %c28 = arith.constant 28 : index
    %28 = memref.load %arg1[%c28] : memref<128xf32, #tpu.memory_space<smem>>
    %c29 = arith.constant 29 : index
    %29 = memref.load %arg1[%c29] : memref<128xf32, #tpu.memory_space<smem>>
    %c30 = arith.constant 30 : index
    %30 = memref.load %arg1[%c30] : memref<128xf32, #tpu.memory_space<smem>>
    %c31 = arith.constant 31 : index
    %31 = memref.load %arg1[%c31] : memref<128xf32, #tpu.memory_space<smem>>
    %c32 = arith.constant 32 : index
    %32 = memref.load %arg1[%c32] : memref<128xf32, #tpu.memory_space<smem>>
    %c33 = arith.constant 33 : index
    %33 = memref.load %arg1[%c33] : memref<128xf32, #tpu.memory_space<smem>>
    %c34 = arith.constant 34 : index
    %34 = memref.load %arg1[%c34] : memref<128xf32, #tpu.memory_space<smem>>
    %c35 = arith.constant 35 : index
    %35 = memref.load %arg1[%c35] : memref<128xf32, #tpu.memory_space<smem>>
    %c36 = arith.constant 36 : index
    %36 = memref.load %arg1[%c36] : memref<128xf32, #tpu.memory_space<smem>>
    %c37 = arith.constant 37 : index
    %37 = memref.load %arg1[%c37] : memref<128xf32, #tpu.memory_space<smem>>
    %c38 = arith.constant 38 : index
    %38 = memref.load %arg1[%c38] : memref<128xf32, #tpu.memory_space<smem>>
    %c39 = arith.constant 39 : index
    %39 = memref.load %arg1[%c39] : memref<128xf32, #tpu.memory_space<smem>>
    %c40 = arith.constant 40 : index
    %40 = memref.load %arg1[%c40] : memref<128xf32, #tpu.memory_space<smem>>
    %c41 = arith.constant 41 : index
    %41 = memref.load %arg1[%c41] : memref<128xf32, #tpu.memory_space<smem>>
    %c42 = arith.constant 42 : index
    %42 = memref.load %arg1[%c42] : memref<128xf32, #tpu.memory_space<smem>>
    %c43 = arith.constant 43 : index
    %43 = memref.load %arg1[%c43] : memref<128xf32, #tpu.memory_space<smem>>
    %c44 = arith.constant 44 : index
    %44 = memref.load %arg1[%c44] : memref<128xf32, #tpu.memory_space<smem>>
    %c45 = arith.constant 45 : index
    %45 = memref.load %arg1[%c45] : memref<128xf32, #tpu.memory_space<smem>>
    %c46 = arith.constant 46 : index
    %46 = memref.load %arg1[%c46] : memref<128xf32, #tpu.memory_space<smem>>
    %c47 = arith.constant 47 : index
    %47 = memref.load %arg1[%c47] : memref<128xf32, #tpu.memory_space<smem>>
    %c48 = arith.constant 48 : index
    %48 = memref.load %arg1[%c48] : memref<128xf32, #tpu.memory_space<smem>>
    %c49 = arith.constant 49 : index
    %49 = memref.load %arg1[%c49] : memref<128xf32, #tpu.memory_space<smem>>
    %c50 = arith.constant 50 : index
    %50 = memref.load %arg1[%c50] : memref<128xf32, #tpu.memory_space<smem>>
    %c51 = arith.constant 51 : index
    %51 = memref.load %arg1[%c51] : memref<128xf32, #tpu.memory_space<smem>>
    %c52 = arith.constant 52 : index
    %52 = memref.load %arg1[%c52] : memref<128xf32, #tpu.memory_space<smem>>
    %c53 = arith.constant 53 : index
    %53 = memref.load %arg1[%c53] : memref<128xf32, #tpu.memory_space<smem>>
    %c54 = arith.constant 54 : index
    %54 = memref.load %arg1[%c54] : memref<128xf32, #tpu.memory_space<smem>>
    %c55 = arith.constant 55 : index
    %55 = memref.load %arg1[%c55] : memref<128xf32, #tpu.memory_space<smem>>
    %c56 = arith.constant 56 : index
    %56 = memref.load %arg1[%c56] : memref<128xf32, #tpu.memory_space<smem>>
    %c57 = arith.constant 57 : index
    %57 = memref.load %arg1[%c57] : memref<128xf32, #tpu.memory_space<smem>>
    %c58 = arith.constant 58 : index
    %58 = memref.load %arg1[%c58] : memref<128xf32, #tpu.memory_space<smem>>
    %c59 = arith.constant 59 : index
    %59 = memref.load %arg1[%c59] : memref<128xf32, #tpu.memory_space<smem>>
    %c60 = arith.constant 60 : index
    %60 = memref.load %arg1[%c60] : memref<128xf32, #tpu.memory_space<smem>>
    %c61 = arith.constant 61 : index
    %61 = memref.load %arg1[%c61] : memref<128xf32, #tpu.memory_space<smem>>
    %c62 = arith.constant 62 : index
    %62 = memref.load %arg1[%c62] : memref<128xf32, #tpu.memory_space<smem>>
    %c63 = arith.constant 63 : index
    %63 = memref.load %arg1[%c63] : memref<128xf32, #tpu.memory_space<smem>>
    %c64 = arith.constant 64 : index
    %64 = memref.load %arg1[%c64] : memref<128xf32, #tpu.memory_space<smem>>
    %c65 = arith.constant 65 : index
    %65 = memref.load %arg1[%c65] : memref<128xf32, #tpu.memory_space<smem>>
    %c66 = arith.constant 66 : index
    %66 = memref.load %arg1[%c66] : memref<128xf32, #tpu.memory_space<smem>>
    %c67 = arith.constant 67 : index
    %67 = memref.load %arg1[%c67] : memref<128xf32, #tpu.memory_space<smem>>
    %c68 = arith.constant 68 : index
    %68 = memref.load %arg1[%c68] : memref<128xf32, #tpu.memory_space<smem>>
    %c69 = arith.constant 69 : index
    %69 = memref.load %arg1[%c69] : memref<128xf32, #tpu.memory_space<smem>>
    %c70 = arith.constant 70 : index
    %70 = memref.load %arg1[%c70] : memref<128xf32, #tpu.memory_space<smem>>
    %c71 = arith.constant 71 : index
    %71 = memref.load %arg1[%c71] : memref<128xf32, #tpu.memory_space<smem>>
    %c72 = arith.constant 72 : index
    %72 = memref.load %arg1[%c72] : memref<128xf32, #tpu.memory_space<smem>>
    %c73 = arith.constant 73 : index
    %73 = memref.load %arg1[%c73] : memref<128xf32, #tpu.memory_space<smem>>
    %c74 = arith.constant 74 : index
    %74 = memref.load %arg1[%c74] : memref<128xf32, #tpu.memory_space<smem>>
    %c75 = arith.constant 75 : index
    %75 = memref.load %arg1[%c75] : memref<128xf32, #tpu.memory_space<smem>>
    %c76 = arith.constant 76 : index
    %76 = memref.load %arg1[%c76] : memref<128xf32, #tpu.memory_space<smem>>
    %c77 = arith.constant 77 : index
    %77 = memref.load %arg1[%c77] : memref<128xf32, #tpu.memory_space<smem>>
    %c78 = arith.constant 78 : index
    %78 = memref.load %arg1[%c78] : memref<128xf32, #tpu.memory_space<smem>>
    %c79 = arith.constant 79 : index
    %79 = memref.load %arg1[%c79] : memref<128xf32, #tpu.memory_space<smem>>
    %c80 = arith.constant 80 : index
    %80 = memref.load %arg1[%c80] : memref<128xf32, #tpu.memory_space<smem>>
    %c81 = arith.constant 81 : index
    %81 = memref.load %arg1[%c81] : memref<128xf32, #tpu.memory_space<smem>>
    %c82 = arith.constant 82 : index
    %82 = memref.load %arg1[%c82] : memref<128xf32, #tpu.memory_space<smem>>
    %c83 = arith.constant 83 : index
    %83 = memref.load %arg1[%c83] : memref<128xf32, #tpu.memory_space<smem>>
    %c84 = arith.constant 84 : index
    %84 = memref.load %arg1[%c84] : memref<128xf32, #tpu.memory_space<smem>>
    %c85 = arith.constant 85 : index
    %85 = memref.load %arg1[%c85] : memref<128xf32, #tpu.memory_space<smem>>
    %c86 = arith.constant 86 : index
    %86 = memref.load %arg1[%c86] : memref<128xf32, #tpu.memory_space<smem>>
    %c87 = arith.constant 87 : index
    %87 = memref.load %arg1[%c87] : memref<128xf32, #tpu.memory_space<smem>>
    %c88 = arith.constant 88 : index
    %88 = memref.load %arg1[%c88] : memref<128xf32, #tpu.memory_space<smem>>
    %c89 = arith.constant 89 : index
    %89 = memref.load %arg1[%c89] : memref<128xf32, #tpu.memory_space<smem>>
    %c90 = arith.constant 90 : index
    %90 = memref.load %arg1[%c90] : memref<128xf32, #tpu.memory_space<smem>>
    %c91 = arith.constant 91 : index
    %91 = memref.load %arg1[%c91] : memref<128xf32, #tpu.memory_space<smem>>
    %c92 = arith.constant 92 : index
    %92 = memref.load %arg1[%c92] : memref<128xf32, #tpu.memory_space<smem>>
    %c93 = arith.constant 93 : index
    %93 = memref.load %arg1[%c93] : memref<128xf32, #tpu.memory_space<smem>>
    %c94 = arith.constant 94 : index
    %94 = memref.load %arg1[%c94] : memref<128xf32, #tpu.memory_space<smem>>
    %c95 = arith.constant 95 : index
    %95 = memref.load %arg1[%c95] : memref<128xf32, #tpu.memory_space<smem>>
    %c96 = arith.constant 96 : index
    %96 = memref.load %arg1[%c96] : memref<128xf32, #tpu.memory_space<smem>>
    %c97 = arith.constant 97 : index
    %97 = memref.load %arg1[%c97] : memref<128xf32, #tpu.memory_space<smem>>
    %c98 = arith.constant 98 : index
    %98 = memref.load %arg1[%c98] : memref<128xf32, #tpu.memory_space<smem>>
    %c99 = arith.constant 99 : index
    %99 = memref.load %arg1[%c99] : memref<128xf32, #tpu.memory_space<smem>>
    %c100 = arith.constant 100 : index
    %100 = memref.load %arg1[%c100] : memref<128xf32, #tpu.memory_space<smem>>
    %c101 = arith.constant 101 : index
    %101 = memref.load %arg1[%c101] : memref<128xf32, #tpu.memory_space<smem>>
    %c102 = arith.constant 102 : index
    %102 = memref.load %arg1[%c102] : memref<128xf32, #tpu.memory_space<smem>>
    %c103 = arith.constant 103 : index
    %103 = memref.load %arg1[%c103] : memref<128xf32, #tpu.memory_space<smem>>
    %c104 = arith.constant 104 : index
    %104 = memref.load %arg1[%c104] : memref<128xf32, #tpu.memory_space<smem>>
    %c0_i32 = arith.constant 0 : i32
    %c16_i32 = arith.constant 16 : i32
    %105 = arith.muli %c0_i32, %c16_i32 : i32
    %106 = tpu.assume_multiple %105, 16 : i32
    %c0_0 = arith.constant 0 : index
    %107 = arith.index_cast %106 : i32 to index
    %c0_1 = arith.constant 0 : index
    %108 = vector.load %arg2[%c0_0, %107, %c0_1] : memref<2x16x128xf32, #tpu.memory_space<vmem>>, vector<1x16x128xf32>
    %109 = vector.shape_cast %108 : vector<1x16x128xf32> to vector<16x128xf32>
    %c1_2 = arith.constant 1 : index
    %110 = arith.index_cast %106 : i32 to index
    %c0_3 = arith.constant 0 : index
    %111 = vector.load %arg2[%c1_2, %110, %c0_3] : memref<2x16x128xf32, #tpu.memory_space<vmem>>, vector<1x16x128xf32>
    %112 = vector.shape_cast %111 : vector<1x16x128xf32> to vector<16x128xf32>
    %113 = vector.broadcast %0 : f32 to vector<16x128xf32>
    %114 = arith.mulf %113, %109 : vector<16x128xf32>
    %115 = vector.broadcast %1 : f32 to vector<16x128xf32>
    %116 = arith.mulf %115, %112 : vector<16x128xf32>
    %117 = arith.addf %114, %116 : vector<16x128xf32>
    %118 = vector.broadcast %16 : f32 to vector<16x128xf32>
    %119 = arith.addf %117, %118 : vector<16x128xf32>
    %120 = math.tanh %119 : vector<16x128xf32>
    %121 = vector.broadcast %24 : f32 to vector<16x128xf32>
    %122 = arith.mulf %120, %121 : vector<16x128xf32>
    %123 = vector.broadcast %32 : f32 to vector<16x128xf32>
    %124 = arith.mulf %120, %123 : vector<16x128xf32>
    %125 = vector.broadcast %40 : f32 to vector<16x128xf32>
    %126 = arith.mulf %120, %125 : vector<16x128xf32>
    %127 = vector.broadcast %48 : f32 to vector<16x128xf32>
    %128 = arith.mulf %120, %127 : vector<16x128xf32>
    %129 = vector.broadcast %56 : f32 to vector<16x128xf32>
    %130 = arith.mulf %120, %129 : vector<16x128xf32>
    %131 = vector.broadcast %64 : f32 to vector<16x128xf32>
    %132 = arith.mulf %120, %131 : vector<16x128xf32>
    %133 = vector.broadcast %72 : f32 to vector<16x128xf32>
    %134 = arith.mulf %120, %133 : vector<16x128xf32>
    %135 = vector.broadcast %80 : f32 to vector<16x128xf32>
    %136 = arith.mulf %120, %135 : vector<16x128xf32>
    %137 = vector.broadcast %2 : f32 to vector<16x128xf32>
    %138 = arith.mulf %137, %109 : vector<16x128xf32>
    %139 = vector.broadcast %3 : f32 to vector<16x128xf32>
    %140 = arith.mulf %139, %112 : vector<16x128xf32>
    %141 = arith.addf %138, %140 : vector<16x128xf32>
    %142 = vector.broadcast %17 : f32 to vector<16x128xf32>
    %143 = arith.addf %141, %142 : vector<16x128xf32>
    %144 = math.tanh %143 : vector<16x128xf32>
    %145 = vector.broadcast %25 : f32 to vector<16x128xf32>
    %146 = arith.mulf %144, %145 : vector<16x128xf32>
    %147 = arith.addf %122, %146 : vector<16x128xf32>
    %148 = vector.broadcast %33 : f32 to vector<16x128xf32>
    %149 = arith.mulf %144, %148 : vector<16x128xf32>
    %150 = arith.addf %124, %149 : vector<16x128xf32>
    %151 = vector.broadcast %41 : f32 to vector<16x128xf32>
    %152 = arith.mulf %144, %151 : vector<16x128xf32>
    %153 = arith.addf %126, %152 : vector<16x128xf32>
    %154 = vector.broadcast %49 : f32 to vector<16x128xf32>
    %155 = arith.mulf %144, %154 : vector<16x128xf32>
    %156 = arith.addf %128, %155 : vector<16x128xf32>
    %157 = vector.broadcast %57 : f32 to vector<16x128xf32>
    %158 = arith.mulf %144, %157 : vector<16x128xf32>
    %159 = arith.addf %130, %158 : vector<16x128xf32>
    %160 = vector.broadcast %65 : f32 to vector<16x128xf32>
    %161 = arith.mulf %144, %160 : vector<16x128xf32>
    %162 = arith.addf %132, %161 : vector<16x128xf32>
    %163 = vector.broadcast %73 : f32 to vector<16x128xf32>
    %164 = arith.mulf %144, %163 : vector<16x128xf32>
    %165 = arith.addf %134, %164 : vector<16x128xf32>
    %166 = vector.broadcast %81 : f32 to vector<16x128xf32>
    %167 = arith.mulf %144, %166 : vector<16x128xf32>
    %168 = arith.addf %136, %167 : vector<16x128xf32>
    %169 = vector.broadcast %4 : f32 to vector<16x128xf32>
    %170 = arith.mulf %169, %109 : vector<16x128xf32>
    %171 = vector.broadcast %5 : f32 to vector<16x128xf32>
    %172 = arith.mulf %171, %112 : vector<16x128xf32>
    %173 = arith.addf %170, %172 : vector<16x128xf32>
    %174 = vector.broadcast %18 : f32 to vector<16x128xf32>
    %175 = arith.addf %173, %174 : vector<16x128xf32>
    %176 = math.tanh %175 : vector<16x128xf32>
    %177 = vector.broadcast %26 : f32 to vector<16x128xf32>
    %178 = arith.mulf %176, %177 : vector<16x128xf32>
    %179 = arith.addf %147, %178 : vector<16x128xf32>
    %180 = vector.broadcast %34 : f32 to vector<16x128xf32>
    %181 = arith.mulf %176, %180 : vector<16x128xf32>
    %182 = arith.addf %150, %181 : vector<16x128xf32>
    %183 = vector.broadcast %42 : f32 to vector<16x128xf32>
    %184 = arith.mulf %176, %183 : vector<16x128xf32>
    %185 = arith.addf %153, %184 : vector<16x128xf32>
    %186 = vector.broadcast %50 : f32 to vector<16x128xf32>
    %187 = arith.mulf %176, %186 : vector<16x128xf32>
    %188 = arith.addf %156, %187 : vector<16x128xf32>
    %189 = vector.broadcast %58 : f32 to vector<16x128xf32>
    %190 = arith.mulf %176, %189 : vector<16x128xf32>
    %191 = arith.addf %159, %190 : vector<16x128xf32>
    %192 = vector.broadcast %66 : f32 to vector<16x128xf32>
    %193 = arith.mulf %176, %192 : vector<16x128xf32>
    %194 = arith.addf %162, %193 : vector<16x128xf32>
    %195 = vector.broadcast %74 : f32 to vector<16x128xf32>
    %196 = arith.mulf %176, %195 : vector<16x128xf32>
    %197 = arith.addf %165, %196 : vector<16x128xf32>
    %198 = vector.broadcast %82 : f32 to vector<16x128xf32>
    %199 = arith.mulf %176, %198 : vector<16x128xf32>
    %200 = arith.addf %168, %199 : vector<16x128xf32>
    %201 = vector.broadcast %6 : f32 to vector<16x128xf32>
    %202 = arith.mulf %201, %109 : vector<16x128xf32>
    %203 = vector.broadcast %7 : f32 to vector<16x128xf32>
    %204 = arith.mulf %203, %112 : vector<16x128xf32>
    %205 = arith.addf %202, %204 : vector<16x128xf32>
    %206 = vector.broadcast %19 : f32 to vector<16x128xf32>
    %207 = arith.addf %205, %206 : vector<16x128xf32>
    %208 = math.tanh %207 : vector<16x128xf32>
    %209 = vector.broadcast %27 : f32 to vector<16x128xf32>
    %210 = arith.mulf %208, %209 : vector<16x128xf32>
    %211 = arith.addf %179, %210 : vector<16x128xf32>
    %212 = vector.broadcast %35 : f32 to vector<16x128xf32>
    %213 = arith.mulf %208, %212 : vector<16x128xf32>
    %214 = arith.addf %182, %213 : vector<16x128xf32>
    %215 = vector.broadcast %43 : f32 to vector<16x128xf32>
    %216 = arith.mulf %208, %215 : vector<16x128xf32>
    %217 = arith.addf %185, %216 : vector<16x128xf32>
    %218 = vector.broadcast %51 : f32 to vector<16x128xf32>
    %219 = arith.mulf %208, %218 : vector<16x128xf32>
    %220 = arith.addf %188, %219 : vector<16x128xf32>
    %221 = vector.broadcast %59 : f32 to vector<16x128xf32>
    %222 = arith.mulf %208, %221 : vector<16x128xf32>
    %223 = arith.addf %191, %222 : vector<16x128xf32>
    %224 = vector.broadcast %67 : f32 to vector<16x128xf32>
    %225 = arith.mulf %208, %224 : vector<16x128xf32>
    %226 = arith.addf %194, %225 : vector<16x128xf32>
    %227 = vector.broadcast %75 : f32 to vector<16x128xf32>
    %228 = arith.mulf %208, %227 : vector<16x128xf32>
    %229 = arith.addf %197, %228 : vector<16x128xf32>
    %230 = vector.broadcast %83 : f32 to vector<16x128xf32>
    %231 = arith.mulf %208, %230 : vector<16x128xf32>
    %232 = arith.addf %200, %231 : vector<16x128xf32>
    %233 = vector.broadcast %8 : f32 to vector<16x128xf32>
    %234 = arith.mulf %233, %109 : vector<16x128xf32>
    %235 = vector.broadcast %9 : f32 to vector<16x128xf32>
    %236 = arith.mulf %235, %112 : vector<16x128xf32>
    %237 = arith.addf %234, %236 : vector<16x128xf32>
    %238 = vector.broadcast %20 : f32 to vector<16x128xf32>
    %239 = arith.addf %237, %238 : vector<16x128xf32>
    %240 = math.tanh %239 : vector<16x128xf32>
    %241 = vector.broadcast %28 : f32 to vector<16x128xf32>
    %242 = arith.mulf %240, %241 : vector<16x128xf32>
    %243 = arith.addf %211, %242 : vector<16x128xf32>
    %244 = vector.broadcast %36 : f32 to vector<16x128xf32>
    %245 = arith.mulf %240, %244 : vector<16x128xf32>
    %246 = arith.addf %214, %245 : vector<16x128xf32>
    %247 = vector.broadcast %44 : f32 to vector<16x128xf32>
    %248 = arith.mulf %240, %247 : vector<16x128xf32>
    %249 = arith.addf %217, %248 : vector<16x128xf32>
    %250 = vector.broadcast %52 : f32 to vector<16x128xf32>
    %251 = arith.mulf %240, %250 : vector<16x128xf32>
    %252 = arith.addf %220, %251 : vector<16x128xf32>
    %253 = vector.broadcast %60 : f32 to vector<16x128xf32>
    %254 = arith.mulf %240, %253 : vector<16x128xf32>
    %255 = arith.addf %223, %254 : vector<16x128xf32>
    %256 = vector.broadcast %68 : f32 to vector<16x128xf32>
    %257 = arith.mulf %240, %256 : vector<16x128xf32>
    %258 = arith.addf %226, %257 : vector<16x128xf32>
    %259 = vector.broadcast %76 : f32 to vector<16x128xf32>
    %260 = arith.mulf %240, %259 : vector<16x128xf32>
    %261 = arith.addf %229, %260 : vector<16x128xf32>
    %262 = vector.broadcast %84 : f32 to vector<16x128xf32>
    %263 = arith.mulf %240, %262 : vector<16x128xf32>
    %264 = arith.addf %232, %263 : vector<16x128xf32>
    %265 = vector.broadcast %10 : f32 to vector<16x128xf32>
    %266 = arith.mulf %265, %109 : vector<16x128xf32>
    %267 = vector.broadcast %11 : f32 to vector<16x128xf32>
    %268 = arith.mulf %267, %112 : vector<16x128xf32>
    %269 = arith.addf %266, %268 : vector<16x128xf32>
    %270 = vector.broadcast %21 : f32 to vector<16x128xf32>
    %271 = arith.addf %269, %270 : vector<16x128xf32>
    %272 = math.tanh %271 : vector<16x128xf32>
    %273 = vector.broadcast %29 : f32 to vector<16x128xf32>
    %274 = arith.mulf %272, %273 : vector<16x128xf32>
    %275 = arith.addf %243, %274 : vector<16x128xf32>
    %276 = vector.broadcast %37 : f32 to vector<16x128xf32>
    %277 = arith.mulf %272, %276 : vector<16x128xf32>
    %278 = arith.addf %246, %277 : vector<16x128xf32>
    %279 = vector.broadcast %45 : f32 to vector<16x128xf32>
    %280 = arith.mulf %272, %279 : vector<16x128xf32>
    %281 = arith.addf %249, %280 : vector<16x128xf32>
    %282 = vector.broadcast %53 : f32 to vector<16x128xf32>
    %283 = arith.mulf %272, %282 : vector<16x128xf32>
    %284 = arith.addf %252, %283 : vector<16x128xf32>
    %285 = vector.broadcast %61 : f32 to vector<16x128xf32>
    %286 = arith.mulf %272, %285 : vector<16x128xf32>
    %287 = arith.addf %255, %286 : vector<16x128xf32>
    %288 = vector.broadcast %69 : f32 to vector<16x128xf32>
    %289 = arith.mulf %272, %288 : vector<16x128xf32>
    %290 = arith.addf %258, %289 : vector<16x128xf32>
    %291 = vector.broadcast %77 : f32 to vector<16x128xf32>
    %292 = arith.mulf %272, %291 : vector<16x128xf32>
    %293 = arith.addf %261, %292 : vector<16x128xf32>
    %294 = vector.broadcast %85 : f32 to vector<16x128xf32>
    %295 = arith.mulf %272, %294 : vector<16x128xf32>
    %296 = arith.addf %264, %295 : vector<16x128xf32>
    %297 = vector.broadcast %12 : f32 to vector<16x128xf32>
    %298 = arith.mulf %297, %109 : vector<16x128xf32>
    %299 = vector.broadcast %13 : f32 to vector<16x128xf32>
    %300 = arith.mulf %299, %112 : vector<16x128xf32>
    %301 = arith.addf %298, %300 : vector<16x128xf32>
    %302 = vector.broadcast %22 : f32 to vector<16x128xf32>
    %303 = arith.addf %301, %302 : vector<16x128xf32>
    %304 = math.tanh %303 : vector<16x128xf32>
    %305 = vector.broadcast %30 : f32 to vector<16x128xf32>
    %306 = arith.mulf %304, %305 : vector<16x128xf32>
    %307 = arith.addf %275, %306 : vector<16x128xf32>
    %308 = vector.broadcast %38 : f32 to vector<16x128xf32>
    %309 = arith.mulf %304, %308 : vector<16x128xf32>
    %310 = arith.addf %278, %309 : vector<16x128xf32>
    %311 = vector.broadcast %46 : f32 to vector<16x128xf32>
    %312 = arith.mulf %304, %311 : vector<16x128xf32>
    %313 = arith.addf %281, %312 : vector<16x128xf32>
    %314 = vector.broadcast %54 : f32 to vector<16x128xf32>
    %315 = arith.mulf %304, %314 : vector<16x128xf32>
    %316 = arith.addf %284, %315 : vector<16x128xf32>
    %317 = vector.broadcast %62 : f32 to vector<16x128xf32>
    %318 = arith.mulf %304, %317 : vector<16x128xf32>
    %319 = arith.addf %287, %318 : vector<16x128xf32>
    %320 = vector.broadcast %70 : f32 to vector<16x128xf32>
    %321 = arith.mulf %304, %320 : vector<16x128xf32>
    %322 = arith.addf %290, %321 : vector<16x128xf32>
    %323 = vector.broadcast %78 : f32 to vector<16x128xf32>
    %324 = arith.mulf %304, %323 : vector<16x128xf32>
    %325 = arith.addf %293, %324 : vector<16x128xf32>
    %326 = vector.broadcast %86 : f32 to vector<16x128xf32>
    %327 = arith.mulf %304, %326 : vector<16x128xf32>
    %328 = arith.addf %296, %327 : vector<16x128xf32>
    %329 = vector.broadcast %14 : f32 to vector<16x128xf32>
    %330 = arith.mulf %329, %109 : vector<16x128xf32>
    %331 = vector.broadcast %15 : f32 to vector<16x128xf32>
    %332 = arith.mulf %331, %112 : vector<16x128xf32>
    %333 = arith.addf %330, %332 : vector<16x128xf32>
    %334 = vector.broadcast %23 : f32 to vector<16x128xf32>
    %335 = arith.addf %333, %334 : vector<16x128xf32>
    %336 = math.tanh %335 : vector<16x128xf32>
    %337 = vector.broadcast %31 : f32 to vector<16x128xf32>
    %338 = arith.mulf %336, %337 : vector<16x128xf32>
    %339 = arith.addf %307, %338 : vector<16x128xf32>
    %340 = vector.broadcast %39 : f32 to vector<16x128xf32>
    %341 = arith.mulf %336, %340 : vector<16x128xf32>
    %342 = arith.addf %310, %341 : vector<16x128xf32>
    %343 = vector.broadcast %47 : f32 to vector<16x128xf32>
    %344 = arith.mulf %336, %343 : vector<16x128xf32>
    %345 = arith.addf %313, %344 : vector<16x128xf32>
    %346 = vector.broadcast %55 : f32 to vector<16x128xf32>
    %347 = arith.mulf %336, %346 : vector<16x128xf32>
    %348 = arith.addf %316, %347 : vector<16x128xf32>
    %349 = vector.broadcast %63 : f32 to vector<16x128xf32>
    %350 = arith.mulf %336, %349 : vector<16x128xf32>
    %351 = arith.addf %319, %350 : vector<16x128xf32>
    %352 = vector.broadcast %71 : f32 to vector<16x128xf32>
    %353 = arith.mulf %336, %352 : vector<16x128xf32>
    %354 = arith.addf %322, %353 : vector<16x128xf32>
    %355 = vector.broadcast %79 : f32 to vector<16x128xf32>
    %356 = arith.mulf %336, %355 : vector<16x128xf32>
    %357 = arith.addf %325, %356 : vector<16x128xf32>
    %358 = vector.broadcast %87 : f32 to vector<16x128xf32>
    %359 = arith.mulf %336, %358 : vector<16x128xf32>
    %360 = arith.addf %328, %359 : vector<16x128xf32>
    %361 = vector.broadcast %88 : f32 to vector<16x128xf32>
    %362 = arith.addf %339, %361 : vector<16x128xf32>
    %363 = math.tanh %362 : vector<16x128xf32>
    %364 = vector.broadcast %96 : f32 to vector<16x128xf32>
    %365 = arith.mulf %363, %364 : vector<16x128xf32>
    %366 = vector.broadcast %104 : f32 to vector<16x128xf32>
    %367 = arith.addf %365, %366 : vector<16x128xf32>
    %368 = vector.broadcast %89 : f32 to vector<16x128xf32>
    %369 = arith.addf %342, %368 : vector<16x128xf32>
    %370 = math.tanh %369 : vector<16x128xf32>
    %371 = vector.broadcast %97 : f32 to vector<16x128xf32>
    %372 = arith.mulf %370, %371 : vector<16x128xf32>
    %373 = arith.addf %367, %372 : vector<16x128xf32>
    %374 = vector.broadcast %90 : f32 to vector<16x128xf32>
    %375 = arith.addf %345, %374 : vector<16x128xf32>
    %376 = math.tanh %375 : vector<16x128xf32>
    %377 = vector.broadcast %98 : f32 to vector<16x128xf32>
    %378 = arith.mulf %376, %377 : vector<16x128xf32>
    %379 = arith.addf %373, %378 : vector<16x128xf32>
    %380 = vector.broadcast %91 : f32 to vector<16x128xf32>
    %381 = arith.addf %348, %380 : vector<16x128xf32>
    %382 = math.tanh %381 : vector<16x128xf32>
    %383 = vector.broadcast %99 : f32 to vector<16x128xf32>
    %384 = arith.mulf %382, %383 : vector<16x128xf32>
    %385 = arith.addf %379, %384 : vector<16x128xf32>
    %386 = vector.broadcast %92 : f32 to vector<16x128xf32>
    %387 = arith.addf %351, %386 : vector<16x128xf32>
    %388 = math.tanh %387 : vector<16x128xf32>
    %389 = vector.broadcast %100 : f32 to vector<16x128xf32>
    %390 = arith.mulf %388, %389 : vector<16x128xf32>
    %391 = arith.addf %385, %390 : vector<16x128xf32>
    %392 = vector.broadcast %93 : f32 to vector<16x128xf32>
    %393 = arith.addf %354, %392 : vector<16x128xf32>
    %394 = math.tanh %393 : vector<16x128xf32>
    %395 = vector.broadcast %101 : f32 to vector<16x128xf32>
    %396 = arith.mulf %394, %395 : vector<16x128xf32>
    %397 = arith.addf %391, %396 : vector<16x128xf32>
    %398 = vector.broadcast %94 : f32 to vector<16x128xf32>
    %399 = arith.addf %357, %398 : vector<16x128xf32>
    %400 = math.tanh %399 : vector<16x128xf32>
    %401 = vector.broadcast %102 : f32 to vector<16x128xf32>
    %402 = arith.mulf %400, %401 : vector<16x128xf32>
    %403 = arith.addf %397, %402 : vector<16x128xf32>
    %404 = vector.broadcast %95 : f32 to vector<16x128xf32>
    %405 = arith.addf %360, %404 : vector<16x128xf32>
    %406 = math.tanh %405 : vector<16x128xf32>
    %407 = vector.broadcast %103 : f32 to vector<16x128xf32>
    %408 = arith.mulf %406, %407 : vector<16x128xf32>
    %409 = arith.addf %403, %408 : vector<16x128xf32>
    %410 = arith.index_cast %106 : i32 to index
    %c0_4 = arith.constant 0 : index
    %411 = vector.load %arg3[%410, %c0_4] : memref<16x128xf32, #tpu.memory_space<vmem>>, vector<16x128xf32>
    tpu.vector_store %arg3[%410, %c0_4], %409 {strides = array<i32>} : memref<16x128xf32, #tpu.memory_space<vmem>>, vector<16x128xf32>,
    %c1_i32 = arith.constant 1 : i32
    return
  }
  func.func @transform_0(%arg0: i32) -> i32 {
    %c0_i32 = arith.constant 0 : i32
    %c0_i32_0 = arith.constant 0 : i32
    return %c0_i32 : i32
  }
  func.func @transform_1(%arg0: i32) -> (i32, i32, i32) {
    %c0_i32 = arith.constant 0 : i32
    %c0_i32_0 = arith.constant 0 : i32
    %c0_i32_1 = arith.constant 0 : i32
    return %c0_i32, %arg0, %c0_i32_0 : i32, i32, i32
  }
  func.func @transform_2(%arg0: i32) -> (i32, i32) {
    %c0_i32 = arith.constant 0 : i32
    %c0_i32_0 = arith.constant 0 : i32
    return %arg0, %c0_i32 : i32, i32
  }
}

</mosaic_0001>

<llo_original>
// kernel: tpu_custom_call.1
$region0: #{tpu_custom_call.1}
  #allocation0 [shape = 'u32[]', space=smem, size = 0x4, offset = 0x4, fixed_abs, tag = 'smem constant byte address 0x4 - core index']
  #allocation1 [shape = 'u32[144,128]{1,0:T(1,128)}', space=vmem, size = 0x12000, scoped, tag = 'internal scratch']
  %s0 = inlined_call_operand.hbm [shape: f32[128], index: 0, kind: input, shape index: {}]
  %s1 = inlined_call_operand.hbm [shape: f32[2,16,128], index: 1, kind: input, shape index: {}]
  %s2 = inlined_call_operand.hbm [shape: f32[16,128], index: 2, kind: output, shape index: {}]
  %s3 = sld [smem:[#allocation0]]
  $region26: #{tpu_custom_call.1} parent=0
    _
  %s5 = ssub.s32 1, %s3
  %s6 = scalar_select 0, %s5, %s3
  $region1: #{tpu_custom_call.1} parent=0
    #allocation2 [shape = 'u8[512]{0}', space=smem, size = 0x200, scoped, tag = 'input window, operand 0, single buffered']
    #allocation3 [shape = 's32[1]{0}', space=sflag, size = 0x4, scoped, tag = 'scoped memory for tpu_custom_call.1']
    #allocation4 [shape = 's32[1]{0}', space=sflag, size = 0x4, scoped, tag = 'scoped memory for tpu_custom_call.1']
    #allocation5 [shape = 's32[1]{0}', space=sflag, size = 0x4, scoped, tag = 'scoped memory for tpu_custom_call.1']
    #allocation6 [shape = 'u8[16384]{0}', space=vmem, size = 0x4000, scoped, tag = 'input window, operand 1, single buffered']
    #allocation7 [shape = 'u8[8192]{0}', space=vmem, size = 0x2000, scoped, tag = 'output window, operand 0, single buffered']
    %7 = vsyncpa [#allocation5], 0
    %8 = vsyncpa [#allocation3], 0
    %9 = vsyncpa [#allocation4], 0
    // Predicated region
    $region2: #{tpu_custom_call.1} parent=1 // pred_check
      _
    $region3: #{tpu_custom_call.1} parent=1 // pred_check_branch
      %11 = sbr.rel (0) target = $region5
    $region4: #{tpu_custom_call.1} parent=1 // pred_region
      %s13 = ssub.s32 16, 16
      %14 = vsyncadd [#allocation5], %s13
      %17 = dma.hbm_to_smem %s0, 16, [#allocation2], [#allocation5]
    $region5: #{tpu_custom_call.1} parent=1 // pred_fallthru
      _
    // Predicated region
    $region6: #{tpu_custom_call.1} parent=1 // pred_check
      _
    $region7: #{tpu_custom_call.1} parent=1 // pred_check_branch
      %19 = sbr.rel (0) target = $region9
    $region8: #{tpu_custom_call.1} parent=1 // pred_region
      %s21 = ssub.s32 512, 512
      %22 = vsyncadd [#allocation3], %s21
      %s23 = sshll.u32 [#allocation6], 4
      %s24 = int_to_ptr.vmem [resolvable:$true] %s23
      %29 = dma.hbm_to_vmem [thread:$0]  %s1, 512, %s24, [#allocation3], 128, 128, 8
    $region9: #{tpu_custom_call.1} parent=1 // pred_fallthru
      _
    // Predicated region
    $region10: #{tpu_custom_call.1} parent=1 // pred_check
      _
    $region11: #{tpu_custom_call.1} parent=1 // pred_check_branch
      %31 = sbr.rel (0) target = $region13
    $region12: #{tpu_custom_call.1} parent=1 // pred_region
      %32 = dma.done [#allocation5], 16
    $region13: #{tpu_custom_call.1} parent=1 // pred_fallthru
      _
    // Predicated region
    $region14: #{tpu_custom_call.1} parent=1 // pred_check
      _
    $region15: #{tpu_custom_call.1} parent=1 // pred_check_branch
      %34 = sbr.rel (0) target = $region17
    $region16: #{tpu_custom_call.1} parent=1 // pred_region
      %35 = dma.done [#allocation3], 512
    $region17: #{tpu_custom_call.1} parent=1 // pred_fallthru
      _
    %36 = sfence
    %s37 = sld [smem:[#allocation2]]
    %s38 = sld [smem:[#allocation2 + $0x1]]
    %s39 = sld [smem:[#allocation2 + $0x2]]
    %s40 = sld [smem:[#allocation2 + $0x3]]
    %s41 = sld [smem:[#allocation2 + $0x4]]
    %s42 = sld [smem:[#allocation2 + $0x5]]
    %s43 = sld [smem:[#allocation2 + $0x6]]
    %s44 = sld [smem:[#allocation2 + $0x7]]
    %s45 = sld [smem:[#allocation2 + $0x8]]
    %s46 = sld [smem:[#allocation2 + $0x9]]
    %s47 = sld [smem:[#allocation2 + $0xa]]
    %s48 = sld [smem:[#allocation2 + $0xb]]
    %s49 = sld [smem:[#allocation2 + $0xc]]
    %s50 = sld [smem:[#allocation2 + $0xd]]
    %s51 = sld [smem:[#allocation2 + $0xe]]
    %s52 = sld [smem:[#allocation2 + $0xf]]
    %s53 = sld [smem:[#allocation2 + $0x10]]
    %s54 = sld [smem:[#allocation2 + $0x11]]
    %s55 = sld [smem:[#allocation2 + $0x12]]
    %s56 = sld [smem:[#allocation2 + $0x13]]
    %s57 = sld [smem:[#allocation2 + $0x14]]
    %s58 = sld [smem:[#allocation2 + $0x15]]
    %s59 = sld [smem:[#allocation2 + $0x16]]
    %s60 = sld [smem:[#allocation2 + $0x17]]
    %s61 = sld [smem:[#allocation2 + $0x18]]
    %s62 = sld [smem:[#allocation2 + $0x19]]
    %s63 = sld [smem:[#allocation2 + $0x1a]]
    %s64 = sld [smem:[#allocation2 + $0x1b]]
    %s65 = sld [smem:[#allocation2 + $0x1c]]
    %s66 = sld [smem:[#allocation2 + $0x1d]]
    %s67 = sld [smem:[#allocation2 + $0x1e]]
    %s68 = sld [smem:[#allocation2 + $0x1f]]
    %s69 = sld [smem:[#allocation2 + $0x20]]
    %s70 = sld [smem:[#allocation2 + $0x21]]
    %s71 = sld [smem:[#allocation2 + $0x22]]
    %s72 = sld [smem:[#allocation2 + $0x23]]
    %s73 = sld [smem:[#allocation2 + $0x24]]
    %s74 = sld [smem:[#allocation2 + $0x25]]
    %s75 = sld [smem:[#allocation2 + $0x26]]
    %s76 = sld [smem:[#allocation2 + $0x27]]
    %s77 = sld [smem:[#allocation2 + $0x28]]
    %s78 = sld [smem:[#allocation2 + $0x29]]
    %s79 = sld [smem:[#allocation2 + $0x2a]]
    %s80 = sld [smem:[#allocation2 + $0x2b]]
    %s81 = sld [smem:[#allocation2 + $0x2c]]
    %s82 = sld [smem:[#allocation2 + $0x2d]]
    %s83 = sld [smem:[#allocation2 + $0x2e]]
    %s84 = sld [smem:[#allocation2 + $0x2f]]
    %s85 = sld [smem:[#allocation2 + $0x30]]
    %s86 = sld [smem:[#allocation2 + $0x31]]
    %s87 = sld [smem:[#allocation2 + $0x32]]
    %s88 = sld [smem:[#allocation2 + $0x33]]
    %s89 = sld [smem:[#allocation2 + $0x34]]
    %s90 = sld [smem:[#allocation2 + $0x35]]
    %s91 = sld [smem:[#allocation2 + $0x36]]
    %s92 = sld [smem:[#allocation2 + $0x37]]
    %s93 = sld [smem:[#allocation2 + $0x38]]
    %s94 = sld [smem:[#allocation2 + $0x39]]
    %s95 = sld [smem:[#allocation2 + $0x3a]]
    %s96 = sld [smem:[#allocation2 + $0x3b]]
    %s97 = sld [smem:[#allocation2 + $0x3c]]
    %s98 = sld [smem:[#allocation2 + $0x3d]]
    %s99 = sld [smem:[#allocation2 + $0x3e]]
    %s100 = sld [smem:[#allocation2 + $0x3f]]
    %s101 = sld [smem:[#allocation2 + $0x40]]
    %s102 = sld [smem:[#allocation2 + $0x41]]
    %s103 = sld [smem:[#allocation2 + $0x42]]
    %s104 = sld [smem:[#allocation2 + $0x43]]
    %s105 = sld [smem:[#allocation2 + $0x44]]
    %s106 = sld [smem:[#allocation2 + $0x45]]
    %s107 = sld [smem:[#allocation2 + $0x46]]
    %s108 = sld [smem:[#allocation2 + $0x47]]
    %s109 = sld [smem:[#allocation2 + $0x48]]
    %s110 = sld [smem:[#allocation2 + $0x49]]
    %s111 = sld [smem:[#allocation2 + $0x4a]]
    %s112 = sld [smem:[#allocation2 + $0x4b]]
    %s113 = sld [smem:[#allocation2 + $0x4c]]
    %s114 = sld [smem:[#allocation2 + $0x4d]]
    %s115 = sld [smem:[#allocation2 + $0x4e]]
    %s116 = sld [smem:[#allocation2 + $0x4f]]
    %s117 = sld [smem:[#allocation2 + $0x50]]
    %s118 = sld [smem:[#allocation2 + $0x51]]
    %s119 = sld [smem:[#allocation2 + $0x52]]
    %s120 = sld [smem:[#allocation2 + $0x53]]
    %s121 = sld [smem:[#allocation2 + $0x54]]
    %s122 = sld [smem:[#allocation2 + $0x55]]
    %s123 = sld [smem:[#allocation2 + $0x56]]
    %s124 = sld [smem:[#allocation2 + $0x57]]
    %s125 = sld [smem:[#allocation2 + $0x58]]
    %s126 = sld [smem:[#allocation2 + $0x59]]
    %s127 = sld [smem:[#allocation2 + $0x5a]]
    %s128 = sld [smem:[#allocation2 + $0x5b]]
    %s129 = sld [smem:[#allocation2 + $0x5c]]
    %s130 = sld [smem:[#allocation2 + $0x5d]]
    %s131 = sld [smem:[#allocation2 + $0x5e]]
    %s132 = sld [smem:[#allocation2 + $0x5f]]
    %s133 = sld [smem:[#allocation2 + $0x60]]
    %s134 = sld [smem:[#allocation2 + $0x61]]
    %s135 = sld [smem:[#allocation2 + $0x62]]
    %s136 = sld [smem:[#allocation2 + $0x63]]
    %s137 = sld [smem:[#allocation2 + $0x64]]
    %s138 = sld [smem:[#allocation2 + $0x65]]
    %s139 = sld [smem:[#allocation2 + $0x66]]
    %s140 = sld [smem:[#allocation2 + $0x67]]
    %s141 = sld [smem:[#allocation2 + $0x68]]
    %v142 = vld [vmem:[#allocation6] sm:$0xff]
    %v143 = vld [vmem:[#allocation6 + $0x8] sm:$0xff]
    %s144 = sadd.s32 0, 16
    %s145 = scalar_lea.vmem [#allocation6], %s144
    %v146 = vld [vmem:[%s145] sm:$0xff]
    %v147 = vld [vmem:[%s145 + $0x8] sm:$0xff]
    %v148 = vstv %s37
    %v149 = vmul.f32 %v148, %v142
    %v150 = vmul.f32 %v148, %v143
    %v151 = vstv %s38
    %v152 = vmul.f32 %v151, %v146
    %v153 = vmul.f32 %v151, %v147
    %v154 = vadd.f32 %v149, %v152
    %v155 = vadd.f32 %v150, %v153
    %v156 = vstv %s53
    %v157 = vadd.f32 %v154, %v156
    %v158 = vadd.f32 %v155, %v156
    %v159 = vtanh.pop %v157
    %v160 = vtanh.pop %v158
    %v161 = vstv %s61
    %v162 = vmul.f32 %v159, %v161
    %v163 = vmul.f32 %v160, %v161
    %v164 = vstv %s69
    %v165 = vmul.f32 %v159, %v164
    %v166 = vmul.f32 %v160, %v164
    %v167 = vstv %s77
    %v168 = vmul.f32 %v159, %v167
    %v169 = vmul.f32 %v160, %v167
    %v170 = vstv %s85
    %v171 = vmul.f32 %v159, %v170
    %v172 = vmul.f32 %v160, %v170
    %v173 = vstv %s93
    %v174 = vmul.f32 %v159, %v173
    %v175 = vmul.f32 %v160, %v173
    %v176 = vstv %s101
    %v177 = vmul.f32 %v159, %v176
    %v178 = vmul.f32 %v160, %v176
    %v179 = vstv %s109
    %v180 = vmul.f32 %v159, %v179
    %v181 = vmul.f32 %v160, %v179
    %v182 = vstv %s117
    %v183 = vmul.f32 %v159, %v182
    %v184 = vmul.f32 %v160, %v182
    %v185 = vstv %s39
    %v186 = vmul.f32 %v185, %v142
    %v187 = vmul.f32 %v185, %v143
    %v188 = vstv %s40
    %v189 = vmul.f32 %v188, %v146
    %v190 = vmul.f32 %v188, %v147
    %v191 = vadd.f32 %v186, %v189
    %v192 = vadd.f32 %v187, %v190
    %v193 = vstv %s54
    %v194 = vadd.f32 %v191, %v193
    %v195 = vadd.f32 %v192, %v193
    %v196 = vtanh.pop %v194
    %v197 = vtanh.pop %v195
    %v198 = vstv %s62
    %v199 = vmul.f32 %v196, %v198
    %v200 = vmul.f32 %v197, %v198
    %v201 = vadd.f32 %v162, %v199
    %v202 = vadd.f32 %v163, %v200
    %v203 = vstv %s70
    %v204 = vmul.f32 %v196, %v203
    %v205 = vmul.f32 %v197, %v203
    %v206 = vadd.f32 %v165, %v204
    %v207 = vadd.f32 %v166, %v205
    %v208 = vstv %s78
    %v209 = vmul.f32 %v196, %v208
    %v210 = vmul.f32 %v197, %v208
    %v211 = vadd.f32 %v168, %v209
    %v212 = vadd.f32 %v169, %v210
    %v213 = vstv %s86
    %v214 = vmul.f32 %v196, %v213
    %v215 = vmul.f32 %v197, %v213
    %v216 = vadd.f32 %v171, %v214
    %v217 = vadd.f32 %v172, %v215
    %v218 = vstv %s94
    %v219 = vmul.f32 %v196, %v218
    %v220 = vmul.f32 %v197, %v218
    %v221 = vadd.f32 %v174, %v219
    %v222 = vadd.f32 %v175, %v220
    %v223 = vstv %s102
    %v224 = vmul.f32 %v196, %v223
    %v225 = vmul.f32 %v197, %v223
    %v226 = vadd.f32 %v177, %v224
    %v227 = vadd.f32 %v178, %v225
    %v228 = vstv %s110
    %v229 = vmul.f32 %v196, %v228
    %v230 = vmul.f32 %v197, %v228
    %v231 = vadd.f32 %v180, %v229
    %v232 = vadd.f32 %v181, %v230
    %v233 = vstv %s118
    %v234 = vmul.f32 %v196, %v233
    %v235 = vmul.f32 %v197, %v233
    %v236 = vadd.f32 %v183, %v234
    %v237 = vadd.f32 %v184, %v235
    %v238 = vstv %s41
    %v239 = vmul.f32 %v238, %v142
    %v240 = vmul.f32 %v238, %v143
    %v241 = vstv %s42
    %v242 = vmul.f32 %v241, %v146
    %v243 = vmul.f32 %v241, %v147
    %v244 = vadd.f32 %v239, %v242
    %v245 = vadd.f32 %v240, %v243
    %v246 = vstv %s55
    %v247 = vadd.f32 %v244, %v246
    %v248 = vadd.f32 %v245, %v246
    %v249 = vtanh.pop %v247
    %v250 = vtanh.pop %v248
    %v251 = vstv %s63
    %v252 = vmul.f32 %v249, %v251
    %v253 = vmul.f32 %v250, %v251
    %v254 = vadd.f32 %v201, %v252
    %v255 = vadd.f32 %v202, %v253
    %v256 = vstv %s71
    %v257 = vmul.f32 %v249, %v256
    %v258 = vmul.f32 %v250, %v256
    %v259 = vadd.f32 %v206, %v257
    %v260 = vadd.f32 %v207, %v258
    %v261 = vstv %s79
    %v262 = vmul.f32 %v249, %v261
    %v263 = vmul.f32 %v250, %v261
    %v264 = vadd.f32 %v211, %v262
    %v265 = vadd.f32 %v212, %v263
    %v266 = vstv %s87
    %v267 = vmul.f32 %v249, %v266
    %v268 = vmul.f32 %v250, %v266
    %v269 = vadd.f32 %v216, %v267
    %v270 = vadd.f32 %v217, %v268
    %v271 = vstv %s95
    %v272 = vmul.f32 %v249, %v271
    %v273 = vmul.f32 %v250, %v271
    %v274 = vadd.f32 %v221, %v272
    %v275 = vadd.f32 %v222, %v273
    %v276 = vstv %s103
    %v277 = vmul.f32 %v249, %v276
    %v278 = vmul.f32 %v250, %v276
    %v279 = vadd.f32 %v226, %v277
    %v280 = vadd.f32 %v227, %v278
    %v281 = vstv %s111
    %v282 = vmul.f32 %v249, %v281
    %v283 = vmul.f32 %v250, %v281
    %v284 = vadd.f32 %v231, %v282
    %v285 = vadd.f32 %v232, %v283
    %v286 = vstv %s119
    %v287 = vmul.f32 %v249, %v286
    %v288 = vmul.f32 %v250, %v286
    %v289 = vadd.f32 %v236, %v287
    %v290 = vadd.f32 %v237, %v288
    %v291 = vstv %s43
    %v292 = vmul.f32 %v291, %v142
    %v293 = vmul.f32 %v291, %v143
    %v294 = vstv %s44
    %v295 = vmul.f32 %v294, %v146
    %v296 = vmul.f32 %v294, %v147
    %v297 = vadd.f32 %v292, %v295
    %v298 = vadd.f32 %v293, %v296
    %v299 = vstv %s56
    %v300 = vadd.f32 %v297, %v299
    %v301 = vadd.f32 %v298, %v299
    %v302 = vtanh.pop %v300
    %v303 = vtanh.pop %v301
    %v304 = vstv %s64
    %v305 = vmul.f32 %v302, %v304
    %v306 = vmul.f32 %v303, %v304
    %v307 = vadd.f32 %v254, %v305
    %v308 = vadd.f32 %v255, %v306
    %v309 = vstv %s72
    %v310 = vmul.f32 %v302, %v309
    %v311 = vmul.f32 %v303, %v309
    %v312 = vadd.f32 %v259, %v310
    %v313 = vadd.f32 %v260, %v311
    %v314 = vstv %s80
    %v315 = vmul.f32 %v302, %v314
    %v316 = vmul.f32 %v303, %v314
    %v317 = vadd.f32 %v264, %v315
    %v318 = vadd.f32 %v265, %v316
    %v319 = vstv %s88
    %v320 = vmul.f32 %v302, %v319
    %v321 = vmul.f32 %v303, %v319
    %v322 = vadd.f32 %v269, %v320
    %v323 = vadd.f32 %v270, %v321
    %v324 = vstv %s96
    %v325 = vmul.f32 %v302, %v324
    %v326 = vmul.f32 %v303, %v324
    %v327 = vadd.f32 %v274, %v325
    %v328 = vadd.f32 %v275, %v326
    %v329 = vstv %s104
    %v330 = vmul.f32 %v302, %v329
    %v331 = vmul.f32 %v303, %v329
    %v332 = vadd.f32 %v279, %v330
    %v333 = vadd.f32 %v280, %v331
    %v334 = vstv %s112
    %v335 = vmul.f32 %v302, %v334
    %v336 = vmul.f32 %v303, %v334
    %v337 = vadd.f32 %v284, %v335
    %v338 = vadd.f32 %v285, %v336
    %v339 = vstv %s120
    %v340 = vmul.f32 %v302, %v339
    %v341 = vmul.f32 %v303, %v339
    %v342 = vadd.f32 %v289, %v340
    %v343 = vadd.f32 %v290, %v341
    %v344 = vstv %s45
    %v345 = vmul.f32 %v344, %v142
    %v346 = vmul.f32 %v344, %v143
    %v347 = vstv %s46
    %v348 = vmul.f32 %v347, %v146
    %v349 = vmul.f32 %v347, %v147
    %v350 = vadd.f32 %v345, %v348
    %v351 = vadd.f32 %v346, %v349
    %v352 = vstv %s57
    %v353 = vadd.f32 %v350, %v352
    %v354 = vadd.f32 %v351, %v352
    %v355 = vtanh.pop %v353
    %v356 = vtanh.pop %v354
    %v357 = vstv %s65
    %v358 = vmul.f32 %v355, %v357
    %v359 = vmul.f32 %v356, %v357
    %v360 = vadd.f32 %v307, %v358
    %v361 = vadd.f32 %v308, %v359
    %v362 = vstv %s73
    %v363 = vmul.f32 %v355, %v362
    %v364 = vmul.f32 %v356, %v362
    %v365 = vadd.f32 %v312, %v363
    %v366 = vadd.f32 %v313, %v364
    %v367 = vstv %s81
    %v368 = vmul.f32 %v355, %v367
    %v369 = vmul.f32 %v356, %v367
    %v370 = vadd.f32 %v317, %v368
    %v371 = vadd.f32 %v318, %v369
    %v372 = vstv %s89
    %v373 = vmul.f32 %v355, %v372
    %v374 = vmul.f32 %v356, %v372
    %v375 = vadd.f32 %v322, %v373
    %v376 = vadd.f32 %v323, %v374
    %v377 = vstv %s97
    %v378 = vmul.f32 %v355, %v377
    %v379 = vmul.f32 %v356, %v377
    %v380 = vadd.f32 %v327, %v378
    %v381 = vadd.f32 %v328, %v379
    %v382 = vstv %s105
    %v383 = vmul.f32 %v355, %v382
    %v384 = vmul.f32 %v356, %v382
    %v385 = vadd.f32 %v332, %v383
    %v386 = vadd.f32 %v333, %v384
    %v387 = vstv %s113
    %v388 = vmul.f32 %v355, %v387
    %v389 = vmul.f32 %v356, %v387
    %v390 = vadd.f32 %v337, %v388
    %v391 = vadd.f32 %v338, %v389
    %v392 = vstv %s121
    %v393 = vmul.f32 %v355, %v392
    %v394 = vmul.f32 %v356, %v392
    %v395 = vadd.f32 %v342, %v393
    %v396 = vadd.f32 %v343, %v394
    %v397 = vstv %s47
    %v398 = vmul.f32 %v397, %v142
    %v399 = vmul.f32 %v397, %v143
    %v400 = vstv %s48
    %v401 = vmul.f32 %v400, %v146
    %v402 = vmul.f32 %v400, %v147
    %v403 = vadd.f32 %v398, %v401
    %v404 = vadd.f32 %v399, %v402
    %v405 = vstv %s58
    %v406 = vadd.f32 %v403, %v405
    %v407 = vadd.f32 %v404, %v405
    %v408 = vtanh.pop %v406
    %v409 = vtanh.pop %v407
    %v410 = vstv %s66
    %v411 = vmul.f32 %v408, %v410
    %v412 = vmul.f32 %v409, %v410
    %v413 = vadd.f32 %v360, %v411
    %v414 = vadd.f32 %v361, %v412
    %v415 = vstv %s74
    %v416 = vmul.f32 %v408, %v415
    %v417 = vmul.f32 %v409, %v415
    %v418 = vadd.f32 %v365, %v416
    %v419 = vadd.f32 %v366, %v417
    %v420 = vstv %s82
    %v421 = vmul.f32 %v408, %v420
    %v422 = vmul.f32 %v409, %v420
    %v423 = vadd.f32 %v370, %v421
    %v424 = vadd.f32 %v371, %v422
    %v425 = vstv %s90
    %v426 = vmul.f32 %v408, %v425
    %v427 = vmul.f32 %v409, %v425
    %v428 = vadd.f32 %v375, %v426
    %v429 = vadd.f32 %v376, %v427
    %v430 = vstv %s98
    %v431 = vmul.f32 %v408, %v430
    %v432 = vmul.f32 %v409, %v430
    %v433 = vadd.f32 %v380, %v431
    %v434 = vadd.f32 %v381, %v432
    %v435 = vstv %s106
    %v436 = vmul.f32 %v408, %v435
    %v437 = vmul.f32 %v409, %v435
    %v438 = vadd.f32 %v385, %v436
    %v439 = vadd.f32 %v386, %v437
    %v440 = vstv %s114
    %v441 = vmul.f32 %v408, %v440
    %v442 = vmul.f32 %v409, %v440
    %v443 = vadd.f32 %v390, %v441
    %v444 = vadd.f32 %v391, %v442
    %v445 = vstv %s122
    %v446 = vmul.f32 %v408, %v445
    %v447 = vmul.f32 %v409, %v445
    %v448 = vadd.f32 %v395, %v446
    %v449 = vadd.f32 %v396, %v447
    %v450 = vstv %s49
    %v451 = vmul.f32 %v450, %v142
    %v452 = vmul.f32 %v450, %v143
    %v453 = vstv %s50
    %v454 = vmul.f32 %v453, %v146
    %v455 = vmul.f32 %v453, %v147
    %v456 = vadd.f32 %v451, %v454
    %v457 = vadd.f32 %v452, %v455
    %v458 = vstv %s59
    %v459 = vadd.f32 %v456, %v458
    %v460 = vadd.f32 %v457, %v458
    %v461 = vtanh.pop %v459
    %v462 = vtanh.pop %v460
    %v463 = vstv %s67
    %v464 = vmul.f32 %v461, %v463
    %v465 = vmul.f32 %v462, %v463
    %v466 = vadd.f32 %v413, %v464
    %v467 = vadd.f32 %v414, %v465
    %v468 = vstv %s75
    %v469 = vmul.f32 %v461, %v468
    %v470 = vmul.f32 %v462, %v468
    %v471 = vadd.f32 %v418, %v469
    %v472 = vadd.f32 %v419, %v470
    %v473 = vstv %s83
    %v474 = vmul.f32 %v461, %v473
    %v475 = vmul.f32 %v462, %v473
    %v476 = vadd.f32 %v423, %v474
    %v477 = vadd.f32 %v424, %v475
    %v478 = vstv %s91
    %v479 = vmul.f32 %v461, %v478
    %v480 = vmul.f32 %v462, %v478
    %v481 = vadd.f32 %v428, %v479
    %v482 = vadd.f32 %v429, %v480
    %v483 = vstv %s99
    %v484 = vmul.f32 %v461, %v483
    %v485 = vmul.f32 %v462, %v483
    %v486 = vadd.f32 %v433, %v484
    %v487 = vadd.f32 %v434, %v485
    %v488 = vstv %s107
    %v489 = vmul.f32 %v461, %v488
    %v490 = vmul.f32 %v462, %v488
    %v491 = vadd.f32 %v438, %v489
    %v492 = vadd.f32 %v439, %v490
    %v493 = vstv %s115
    %v494 = vmul.f32 %v461, %v493
    %v495 = vmul.f32 %v462, %v493
    %v496 = vadd.f32 %v443, %v494
    %v497 = vadd.f32 %v444, %v495
    %v498 = vstv %s123
    %v499 = vmul.f32 %v461, %v498
    %v500 = vmul.f32 %v462, %v498
    %v501 = vadd.f32 %v448, %v499
    %v502 = vadd.f32 %v449, %v500
    %v503 = vstv %s51
    %v504 = vmul.f32 %v503, %v142
    %v505 = vmul.f32 %v503, %v143
    %v506 = vstv %s52
    %v507 = vmul.f32 %v506, %v146
    %v508 = vmul.f32 %v506, %v147
    %v509 = vadd.f32 %v504, %v507
    %v510 = vadd.f32 %v505, %v508
    %v511 = vstv %s60
    %v512 = vadd.f32 %v509, %v511
    %v513 = vadd.f32 %v510, %v511
    %v514 = vtanh.pop %v512
    %v515 = vtanh.pop %v513
    %v516 = vstv %s68
    %v517 = vmul.f32 %v514, %v516
    %v518 = vmul.f32 %v515, %v516
    %v519 = vadd.f32 %v466, %v517
    %v520 = vadd.f32 %v467, %v518
    %v521 = vstv %s76
    %v522 = vmul.f32 %v514, %v521
    %v523 = vmul.f32 %v515, %v521
    %v524 = vadd.f32 %v471, %v522
    %v525 = vadd.f32 %v472, %v523
    %v526 = vstv %s84
    %v527 = vmul.f32 %v514, %v526
    %v528 = vmul.f32 %v515, %v526
    %v529 = vadd.f32 %v476, %v527
    %v530 = vadd.f32 %v477, %v528
    %v531 = vstv %s92
    %v532 = vmul.f32 %v514, %v531
    %v533 = vmul.f32 %v515, %v531
    %v534 = vadd.f32 %v481, %v532
    %v535 = vadd.f32 %v482, %v533
    %v536 = vstv %s100
    %v537 = vmul.f32 %v514, %v536
    %v538 = vmul.f32 %v515, %v536
    %v539 = vadd.f32 %v486, %v537
    %v540 = vadd.f32 %v487, %v538
    %v541 = vstv %s108
    %v542 = vmul.f32 %v514, %v541
    %v543 = vmul.f32 %v515, %v541
    %v544 = vadd.f32 %v491, %v542
    %v545 = vadd.f32 %v492, %v543
    %v546 = vstv %s116
    %v547 = vmul.f32 %v514, %v546
    %v548 = vmul.f32 %v515, %v546
    %v549 = vadd.f32 %v496, %v547
    %v550 = vadd.f32 %v497, %v548
    %v551 = vstv %s124
    %v552 = vmul.f32 %v514, %v551
    %v553 = vmul.f32 %v515, %v551
    %v554 = vadd.f32 %v501, %v552
    %v555 = vadd.f32 %v502, %v553
    %v556 = vstv %s125
    %v557 = vadd.f32 %v519, %v556
    %v558 = vadd.f32 %v520, %v556
    %v559 = vtanh.pop %v557
    %v560 = vtanh.pop %v558
    %v561 = vstv %s133
    %v562 = vmul.f32 %v559, %v561
    %v563 = vmul.f32 %v560, %v561
    %v564 = vstv %s141
    %v565 = vadd.f32 %v562, %v564
    %v566 = vadd.f32 %v563, %v564
    %v567 = vstv %s126
    %v568 = vadd.f32 %v524, %v567
    %v569 = vadd.f32 %v525, %v567
    %v570 = vtanh.pop %v568
    %v571 = vtanh.pop %v569
    %v572 = vstv %s134
    %v573 = vmul.f32 %v570, %v572
    %v574 = vmul.f32 %v571, %v572
    %v575 = vadd.f32 %v565, %v573
    %v576 = vadd.f32 %v566, %v574
    %v577 = vstv %s127
    %v578 = vadd.f32 %v529, %v577
    %v579 = vadd.f32 %v530, %v577
    %v580 = vtanh.pop %v578
    %v581 = vtanh.pop %v579
    %v582 = vstv %s135
    %v583 = vmul.f32 %v580, %v582
    %v584 = vmul.f32 %v581, %v582
    %v585 = vadd.f32 %v575, %v583
    %v586 = vadd.f32 %v576, %v584
    %v587 = vstv %s128
    %v588 = vadd.f32 %v534, %v587
    %v589 = vadd.f32 %v535, %v587
    %v590 = vtanh.pop %v588
    %v591 = vtanh.pop %v589
    %v592 = vstv %s136
    %v593 = vmul.f32 %v590, %v592
    %v594 = vmul.f32 %v591, %v592
    %v595 = vadd.f32 %v585, %v593
    %v596 = vadd.f32 %v586, %v594
    %v597 = vstv %s129
    %v598 = vadd.f32 %v539, %v597
    %v599 = vadd.f32 %v540, %v597
    %v600 = vtanh.pop %v598
    %v601 = vtanh.pop %v599
    %v602 = vstv %s137
    %v603 = vmul.f32 %v600, %v602
    %v604 = vmul.f32 %v601, %v602
    %v605 = vadd.f32 %v595, %v603
    %v606 = vadd.f32 %v596, %v604
    %v607 = vstv %s130
    %v608 = vadd.f32 %v544, %v607
    %v609 = vadd.f32 %v545, %v607
    %v610 = vtanh.pop %v608
    %v611 = vtanh.pop %v609
    %v612 = vstv %s138
    %v613 = vmul.f32 %v610, %v612
    %v614 = vmul.f32 %v611, %v612
    %v615 = vadd.f32 %v605, %v613
    %v616 = vadd.f32 %v606, %v614
    %v617 = vstv %s131
    %v618 = vadd.f32 %v549, %v617
    %v619 = vadd.f32 %v550, %v617
    %v620 = vtanh.pop %v618
    %v621 = vtanh.pop %v619
    %v622 = vstv %s139
    %v623 = vmul.f32 %v620, %v622
    %v624 = vmul.f32 %v621, %v622
    %v625 = vadd.f32 %v615, %v623
    %v626 = vadd.f32 %v616, %v624
    %v627 = vstv %s132
    %v628 = vadd.f32 %v554, %v627
    %v629 = vadd.f32 %v555, %v627
    %v630 = vtanh.pop %v628
    %v631 = vtanh.pop %v629
    %v632 = vstv %s140
    %v633 = vmul.f32 %v630, %v632
    %v634 = vmul.f32 %v631, %v632
    %v635 = vadd.f32 %v625, %v633
    %v636 = vadd.f32 %v626, %v634
    %637 = vst [vmem:[#allocation7] sm:$0xff] %v635
    %638 = vst [vmem:[#allocation7 + $0x8] sm:$0xff] %v636
    // Predicated region
    $region18: #{tpu_custom_call.1} parent=1 // pred_check
      _
    $region19: #{tpu_custom_call.1} parent=1 // pred_check_branch
      %640 = sbr.rel (0) target = $region21
    $region20: #{tpu_custom_call.1} parent=1 // pred_region
      %s642 = ssub.s32 256, 256
      %643 = vsyncadd [#allocation4], %s642
      %s644 = sshll.u32 [#allocation7], 4
      %s645 = int_to_ptr.vmem [resolvable:$true] %s644
      %650 = dma.vmem_to_hbm [thread:$0]  %s645, 256, %s2, [#allocation4], 128, 128, 8
    $region21: #{tpu_custom_call.1} parent=1 // pred_fallthru
      _
    // Predicated region
    $region22: #{tpu_custom_call.1} parent=1 // pred_check
      _
    $region23: #{tpu_custom_call.1} parent=1 // pred_check_branch
      %652 = sbr.rel (0) target = $region25
    $region24: #{tpu_custom_call.1} parent=1 // pred_region
      %653 = dma.done [#allocation4], 256
    $region25: #{tpu_custom_call.1} parent=1 // pred_fallthru
      _
    %654 = vsyncpa [#allocation3], 1
    %655 = vsyncpa [#allocation4], 1
    %656 = vsyncpa [#allocation5], 1

</llo_original>
